<compile_context>
chip_gen: v5e
topology: v5e:2x2
jax: 0.10.0
libtpu: 0.0.40
codegen_flags: <defaults>
</compile_context>

<pallas_src>
import math
import functools

import jax
import jax.numpy as jnp
from jax.experimental import pallas as pl
from jax.experimental.pallas import tpu as pltpu


def _posemb_kernel_lane_dense(x_ref, freqs_ref, o_ref, *, half_dim: int):
    # x_ref:     (tile_b, 1)   f32
    # freqs_ref: (1, dim)      f32, = concat([freqs, freqs])
    # o_ref:     (tile_b, dim)
    x = x_ref[...]                                   # (tile_b, 1)
    freqs = freqs_ref[...]                           # (1, dim)
    arg = x * freqs                                  # broadcast outer product
    dim = freqs.shape[-1]
    col = jax.lax.broadcasted_iota(jnp.int32, (1, dim), 1)
    is_cos = col >= half_dim                         # (1, dim) column mask
    # Single unmasked, lane-dense store of the full tile.
    o_ref[...] = jnp.where(is_cos, jnp.cos(arg), jnp.sin(arg)).astype(o_ref.dtype)


def _posemb_kernel_split(x_ref, freqs_ref, o_ref, *, half_dim: int):
    # Used only when half_dim % 128 == 0: both slice stores are lane-aligned,
    # and we only pay `dim/2` transcendentals per row instead of `dim`.
    x = x_ref[...]                                   # (tile_b, 1)
    freqs = freqs_ref[...]                           # (1, half_dim)
    arg = x * freqs                                  # (tile_b, half_dim)
    o_ref[:, :half_dim] = jnp.sin(arg).astype(o_ref.dtype)
    o_ref[:, half_dim:] = jnp.cos(arg).astype(o_ref.dtype)


def _round_up(n: int, m: int) -> int:
    return ((n + m - 1) // m) * m


def _choose_tile_b(b: int, dim: int) -> int:
    # Double-buffered output tile must fit v5e's 16 MiB default scoped VMEM
    # (also comfortably inside v6e/v7x defaults): 2 * tile_b * dim * 4 <= 12 MiB.
    vmem_budget = 12 << 20
    cap_vmem = max(8, (vmem_budget // (2 * dim * 4)) // 8 * 8)
    # Guarantee >= 2 grid steps whenever possible so "parallel" actually
    # shards across v7x's 2 TensorCores (no-op on single-TC v5e/v6e).
    cap_split = _round_up(-(-b // 2), 8) if b > 8 else 8
    # Small dim -> big row tiles so each grid step moves a sizable slab
    # (per-step overhead ~0.35 us).
    target = 4096 if dim <= 512 else 1024
    return max(8, min(target, cap_vmem, cap_split, _round_up(b, 8)))


def sinusoidal_pos_emb(x: jax.Array, dim: int, *, tile_b: int | None = None,
                       out_dtype=jnp.float32) -> jax.Array:
    """Pallas equivalent of SinusoidalPosEmb(dim)(x). x: (B,) -> (B, dim)."""
    assert dim % 2 == 0, "dim must be even"
    assert dim >= 4, "dim must be >= 4 (half_dim - 1 > 0)"
    half_dim = dim // 2
    b = x.shape[0]

    # Compile-time-constant frequency table.
    scale = math.log(10000.0) / (half_dim - 1)
    freqs_half = jnp.exp(-scale * jnp.arange(half_dim, dtype=jnp.float32))

    if tile_b is None:
        tile_b = _choose_tile_b(b, dim)
    else:
        tile_b = max(8, (tile_b // 8) * 8)

    grid = (pl.cdiv(b, tile_b),)          # ragged last block: OOB rows dropped
    x2 = x.astype(jnp.float32).reshape(b, 1)

    lane_dense = (half_dim % 128) != 0
    if lane_dense:
        freqs = jnp.concatenate([freqs_half, freqs_half]).reshape(1, dim)
        kernel = functools.partial(_posemb_kernel_lane_dense, half_dim=half_dim)
        freqs_block = (1, dim)
    else:
        freqs = freqs_half.reshape(1, half_dim)
        kernel = functools.partial(_posemb_kernel_split, half_dim=half_dim)
        freqs_block = (1, half_dim)

    return pl.pallas_call(
        kernel,
        out_shape=jax.ShapeDtypeStruct((b, dim), out_dtype),
        grid=grid,
        in_specs=[
            pl.BlockSpec((tile_b, 1), lambda i: (i, 0)),      # x rows for this tile
            pl.BlockSpec(freqs_block, lambda i: (0, 0)),      # constant freq table
        ],
        out_specs=pl.BlockSpec((tile_b, dim), lambda i: (i, 0)),
        compiler_params=pltpu.CompilerParams(
            dimension_semantics=("parallel",),                # 2-TC sharding on v7x
        ),
    )(x2, freqs)


def _reference(x: jax.Array, dim: int) -> jax.Array:
    half_dim = dim // 2
    emb = math.log(10000.0) / (half_dim - 1)
    emb = jnp.exp(jnp.arange(half_dim, dtype=jnp.float32) * -emb)
    emb = x.astype(jnp.float32)[:, None] * emb[None, :]
    return jnp.concatenate([jnp.sin(emb), jnp.cos(emb)], axis=-1)


if __name__ == "__main__":
    key = jax.random.PRNGKey(0)

    # Case 1: small dim (lane-dense path) with ragged last block (B=10, tile=8).
    B1, DIM1 = 10, 32
    x1 = jax.random.uniform(key, (B1,), dtype=jnp.float32, minval=0.0, maxval=1000.0)
    out1 = jax.block_until_ready(sinusoidal_pos_emb(x1, DIM1, tile_b=8))
    ref1 = _reference(x1, DIM1)
    assert out1.shape == (B1, DIM1), out1.shape
    assert jnp.allclose(out1, ref1, atol=1e-4, rtol=1e-5), "mismatch (lane-dense path)"

    # Case 2: half_dim multiple of 128 (aligned split-store path).
    B2, DIM2 = 16, 256
    x2 = jax.random.uniform(jax.random.PRNGKey(1), (B2,), dtype=jnp.float32,
                            minval=0.0, maxval=1000.0)
    out2 = jax.block_until_ready(sinusoidal_pos_emb(x2, DIM2))
    ref2 = _reference(x2, DIM2)
    assert out2.shape == (B2, DIM2), out2.shape
    assert jnp.allclose(out2, ref2, atol=1e-4, rtol=1e-5), "mismatch (split path)"

    print("KERNEL_OK")
</pallas_src>

<mosaic_0001>
module attributes {stable_mosaic.version = 11 : i64} {
  func.func @_posemb_kernel_lane_dense(%arg0: i32, %arg1: memref<8x1xf32, #tpu.memory_space<vmem>>, %arg2: memref<1x32xf32, #tpu.memory_space<vmem>>, %arg3: memref<8x32xf32, #tpu.memory_space<vmem>>) attributes {dimension_semantics = [#tpu.dimension_semantics<parallel>], iteration_bounds = array<i64: 2>, scalar_prefetch = 0 : i64, scratch_operands = 0 : i64, tpu.core_type = #tpu.core_type<tc>, window_params = [{transform_indices = @transform_0, window_bounds = array<i64: 8, 1>}, {pipeline_mode = #tpu.pipeline_mode<synchronous>, transform_indices = @transform_1, window_bounds = array<i64: 1, 32>}, {transform_indices = @transform_2, window_bounds = array<i64: 8, 32>}]} {
    %c0 = arith.constant 0 : index
    %c0_0 = arith.constant 0 : index
    %0 = vector.load %arg1[%c0, %c0_0] : memref<8x1xf32, #tpu.memory_space<vmem>>, vector<8x1xf32>
    %c0_1 = arith.constant 0 : index
    %c0_2 = arith.constant 0 : index
    %1 = vector.load %arg2[%c0_1, %c0_2] : memref<1x32xf32, #tpu.memory_space<vmem>>, vector<1x32xf32>
    %2 = vector.broadcast %0 : vector<8x1xf32> to vector<8x32xf32>
    %3 = vector.broadcast %1 : vector<1x32xf32> to vector<8x32xf32>
    %4 = arith.mulf %2, %3 : vector<8x32xf32>
    %5 = tpu.iota {dimensions = array<i32: 1>} : vector<1x32xi32>
    %c16_i32 = arith.constant 16 : i32
    %6 = vector.broadcast %c16_i32 : i32 to vector<1x32xi32>
    %7 = arith.cmpi sge, %5, %6 : vector<1x32xi32>
    %8 = math.cos %4 : vector<8x32xf32>
    %9 = math.sin %4 : vector<8x32xf32>
    %10 = vector.shape_cast %7 : vector<1x32xi1> to vector<1x32xi1>
    %11 = vector.broadcast %10 : vector<1x32xi1> to vector<8x32xi1>
    %12 = arith.select %11, %8, %9 : vector<8x32xi1>, vector<8x32xf32>
    %c0_3 = arith.constant 0 : index
    %c0_4 = arith.constant 0 : index
    %13 = vector.load %arg3[%c0_3, %c0_4] : memref<8x32xf32, #tpu.memory_space<vmem>>, vector<8x32xf32>
    tpu.vector_store %arg3[%c0_3, %c0_4], %12 {strides = array<i32>} : memref<8x32xf32, #tpu.memory_space<vmem>>, vector<8x32xf32>,
    return
  }
  func.func @transform_0(%arg0: i32) -> (i32, i32) {
    %c0_i32 = arith.constant 0 : i32
    %c0_i32_0 = arith.constant 0 : i32
    return %arg0, %c0_i32 : i32, i32
  }
  func.func @transform_1(%arg0: i32) -> (i32, i32) {
    %c0_i32 = arith.constant 0 : i32
    %c0_i32_0 = arith.constant 0 : i32
    %c0_i32_1 = arith.constant 0 : i32
    return %c0_i32, %c0_i32_0 : i32, i32
  }
  func.func @transform_2(%arg0: i32) -> (i32, i32) {
    %c0_i32 = arith.constant 0 : i32
    %c0_i32_0 = arith.constant 0 : i32
    return %arg0, %c0_i32 : i32, i32
  }
}

</mosaic_0001>

<llo_original>
// kernel: tpu_custom_call.1
$region0: #{tpu_custom_call.1}
  #allocation0 [shape = 'u32[]', space=smem, size = 0x4, offset = 0x4, fixed_abs, tag = 'smem constant byte address 0x4 - core index']
  #allocation1 [shape = 'u32[72,128]{1,0:T(1,128)}', space=vmem, size = 0x9000, scoped, tag = 'internal scratch']
  %s0 = inlined_call_operand.vmem [shape: f32[10,1], index: 0, kind: input, shape index: {}]
  %s1 = inlined_call_operand.vmem [shape: f32[1,32], index: 1, kind: input, shape index: {}]
  %s2 = inlined_call_operand.hbm [shape: f32[10,32], index: 2, kind: output, shape index: {}]
  %s3 = sld [smem:[#allocation0]]
  $region41: #{tpu_custom_call.1} parent=0
    _
  %s5 = ssub.s32 1, %s3
  %s6 = scalar_select 0, %s5, %s3
  $region1: #{tpu_custom_call.1} parent=0
    #allocation2 [shape = 'u8[8192]{0}', space=vmem, size = 0x2000, scoped, tag = 'output window, operand 0']
    #allocation3 [shape = 's32[2]{0}', space=sflag, size = 0x8, scoped, tag = 'scoped memory for tpu_custom_call.1']
    %7 = vsyncpa [#allocation3], 0
    %s8 = scalar_lea.sflag [#allocation3], 1
    %9 = vsyncpa %s8, 0
    loop: start=0, step=1, limit=4
    $region2: #{tpu_custom_call.1} parent=1 // loop_pre_header
      _
    $region3: #{tpu_custom_call.1} parent=1 // loop_header
      %s11 = sphi 0, %s15
      %p12 = scmp.ge.s32.totalorder %s11, 4
      %s21 = sphi 0, %s23
      %s24 = sphi 0, %s21
      %s25 = sphi 0, %s24
      %s41 = sphi 0, %s25
      %s45 = sphi 0, %s45
      %s47 = sphi 0, %s45
      %s48 = sphi 0, %s47
      %s62 = sphi 0, %s48
      %s68 = sphi 0, %s70
      %s71 = sphi 0, %s68
      %s72 = sphi 0, %s71
      %s88 = sphi 0, %s72
    $region4: #{tpu_custom_call.1} parent=1 // loop_header_branch
      %14 = sbr.rel (%p12) target = $region8
    $region5: #{tpu_custom_call.1} parent=1 // loop_body
      %s16 = ssub.s32 %s11, 1
      %s17 = ssub.s32 %s11, 2
      %s18 = sadd.s32 %s11, 1
      %s19 = ssub.s32 %s11, %s18
      %p20 = scmp.eq.s32.totalorder %s19, 0
      %s22 = sadd.s32 %s21, 1
      %s23 = scalar_select %p20, %s21, %s22
      %p26 = pneg %p20
      %p27 = scmp.eq.s32.totalorder %s11, 1
      %p28 = por %p26, %p27
      %p29 = scmp.ne.s32.totalorder %s21, %s24
      %p30 = scmp.eq.s32.totalorder %s11, 0
      %p31 = por %p29, %p30
      %p32 = scmp.ne.s32.totalorder %s21, %s24
      %p33 = scmp.eq.s32.totalorder %s16, 1
      %p34 = por %p32, %p33
      %p35 = scmp.ne.s32.totalorder %s24, %s25
      %p36 = scmp.eq.s32.totalorder %s16, 0
      %p37 = por %p35, %p36
      %p38 = scmp.ne.s32.totalorder %s24, %s25
      %p39 = scmp.eq.s32.totalorder %s17, 1
      %p40 = por %p38, %p39
      %p42 = scmp.ne.s32.totalorder %s25, %s41
      %p43 = scmp.eq.s32.totalorder %s17, 0
      %p44 = por %p42, %p43
      %s46 = sadd.s32 %s45, 1
      %p49 = scmp.eq.s32.totalorder %s11, 1
      %p50 = scmp.ne.s32.totalorder %s45, %s47
      %p51 = scmp.eq.s32.totalorder %s11, 0
      %p52 = por %p50, %p51
      %p53 = scmp.ne.s32.totalorder %s45, %s47
      %p54 = scmp.eq.s32.totalorder %s16, 1
      %p55 = por %p53, %p54
      %p56 = scmp.ne.s32.totalorder %s47, %s48
      %p57 = scmp.eq.s32.totalorder %s16, 0
      %p58 = por %p56, %p57
      %p59 = scmp.ne.s32.totalorder %s47, %s48
      %p60 = scmp.eq.s32.totalorder %s17, 1
      %p61 = por %p59, %p60
      %p63 = scmp.ne.s32.totalorder %s48, %s62
      %p64 = scmp.eq.s32.totalorder %s17, 0
      %p65 = por %p63, %p64
      %s66 = ssub.s32 %s11, %s18
      %p67 = scmp.eq.s32.totalorder %s66, 0
      %s69 = sadd.s32 %s68, 1
      %s70 = scalar_select %p67, %s68, %s69
      %p73 = pneg %p67
      %p74 = scmp.eq.s32.totalorder %s11, 1
      %p75 = por %p73, %p74
      %p76 = scmp.ne.s32.totalorder %s68, %s71
      %p77 = scmp.eq.s32.totalorder %s11, 0
      %p78 = por %p76, %p77
      %p79 = scmp.ne.s32.totalorder %s68, %s71
      %p80 = scmp.eq.s32.totalorder %s16, 1
      %p81 = por %p79, %p80
      %p82 = scmp.ne.s32.totalorder %s71, %s72
      %p83 = scmp.eq.s32.totalorder %s16, 0
      %p84 = por %p82, %p83
      %p85 = scmp.ne.s32.totalorder %s71, %s72
      %p86 = scmp.eq.s32.totalorder %s17, 1
      %p87 = por %p85, %p86
      %p89 = scmp.ne.s32.totalorder %s72, %s88
      %p90 = scmp.eq.s32.totalorder %s17, 0
      %p91 = por %p89, %p90
      %p92 = scmp.le.s32.totalorder 1, %s11
      %p93 = scmp.lt.s32.totalorder %s11, 3
      %p94 = pnand %p92, %p93
      %p95 = pneg %p94
      // Predicated region
      $region9: #{tpu_custom_call.1} parent=5 // pred_check
        _
      $region10: #{tpu_custom_call.1} parent=5 // pred_check_branch
        %97 = sbr.rel (%p94) target = $region12
      $region11: #{tpu_custom_call.1} parent=5 // pred_region
        %s98 = ssub.s32 %s11, 1
        // Predicated region
        $region13: #{tpu_custom_call.1} parent=11 // pred_check
          %p99 = pneg %p58
        $region14: #{tpu_custom_call.1} parent=11 // pred_check_branch
          %101 = sbr.rel (%p99) target = $region16
        $region15: #{tpu_custom_call.1} parent=11 // pred_region
          _
        $region16: #{tpu_custom_call.1} parent=11 // pred_fallthru
          _
      $region12: #{tpu_custom_call.1} parent=5 // pred_fallthru
        _
      %p102 = scmp.lt.s32.totalorder %s11, 2
      // Predicated region
      $region17: #{tpu_custom_call.1} parent=5 // pred_check
        %p103 = pneg %p102
      $region18: #{tpu_custom_call.1} parent=5 // pred_check_branch
        %105 = sbr.rel (%p103) target = $region20
      $region19: #{tpu_custom_call.1} parent=5 // pred_region
        // Predicated region
        $region21: #{tpu_custom_call.1} parent=19 // pred_check
          %p106 = pneg %p31
        $region22: #{tpu_custom_call.1} parent=19 // pred_check_branch
          %108 = sbr.rel (%p106) target = $region24
        $region23: #{tpu_custom_call.1} parent=19 // pred_region
          %p109 = scmp.lt.s32.totalorder %s11, 1
          %s110 = scalar_select %p109, %s11, 1
          %s111 = smul.addr %s110, 8
          %s112 = scalar_lea.vmem %s0, %s111
        $region24: #{tpu_custom_call.1} parent=19 // pred_fallthru
          _
      $region20: #{tpu_custom_call.1} parent=5 // pred_fallthru
        _
      %p113 = scmp.le.s32.totalorder 1, %s11
      %p114 = scmp.lt.s32.totalorder %s11, 3
      %p115 = pnand %p113, %p114
      %p116 = pneg %p115
      // Predicated region
      $region25: #{tpu_custom_call.1} parent=5 // pred_check
        _
      $region26: #{tpu_custom_call.1} parent=5 // pred_check_branch
        %118 = sbr.rel (%p115) target = $region28
      $region27: #{tpu_custom_call.1} parent=5 // pred_region
        %s119 = ssub.s32 %s11, 1
        %p120 = scmp.lt.s32.totalorder %s16, 1
        %s121 = scalar_select %p120, %s16, 1
        %s122 = smul.addr %s121, 8
        %s123 = scalar_lea.vmem %s0, %s122
        %p124 = pneg %p37
        %p125 = pneg %p34
        %p126 = pneg %p58
        %p127 = pneg %p55
        %p128 = pneg %p84
        %p129 = pneg %p81
        %s130 = sand.u32 %s71, 1
        %s131 = scalar_lea.sflag [#allocation3], %s130
        %s132 = sand.u32 %s71, 1
        %s133 = smul.addr %s132, 8
        %s134 = scalar_lea.vmem [#allocation2], %s133
        %p135 = scmp.lt.s32.totalorder %s16, 1
        %s136 = scalar_select %p135, %s16, 1
        %s137 = smul.addr %s136, 8
        %s138 = scalar_lea.vmem %s0, %s137
        %v139 = vld [vmem:[%s138] sm:$0xff]
        %v140 = vld [vmem:[%s1] sm:$0x1]
        %142 = vset.pattern.permute.xlu0 0
        %143 = vperm.xlu0 %142, %v139
        %v144 = vpop.permute.xlu0 %143
        %v147 = vperm.slane %v140, 0
        %v149 = vmul.f32 %v144, %v147
        %v150 = vlaneseq
        %v151 = vand.u32 %v150, 127
        %vm152 = vcmp.ge.s32.totalorder %v151, 16
        %v153 = vand.u32 2147483647, %v149
        %vm154 = vcmp.le.f32.partialorder %v153, 0.7853982
        %vm155 = vcmp.lt.s32.totalorder %v149, 0
        %v156 = vand.u32 %v149, 2139095040
        %v157 = vshrl.u32 %v156, 23
        %v158 = vsub.s32 %v157, 127
        %v159 = vand.u32 2147483647, %v149
        %v160 = vand.u32 %v159, 8388607
        %v161 = vor.u32 %v160, 8388608
        %v162 = vsub.s32 0, %v161
        %v163 = vadd.s32 %v158, 1
        %vm164 = vcmp.gt.s32.totalorder %v163, 0
        %v165 = vsel %vm164, %v163, 0
        %v166 = vshrl.u32 %v165, 5
        %v167 = vand.u32 %v165, 31
        %v168 = vsub.s32 32, %v167
        %v169 = vshrl.u32 683565275, %v168
        %v170 = vshll.u32 683565275, %v167
        %v171 = vshrl.u32 2475754826, %v168
        %v172 = vor.u32 %v170, %v171
        %v173 = vshll.u32 2475754826, %v167
        %v174 = vshrl.u32 2131351028, %v168
        %v175 = vor.u32 %v173, %v174
        %v176 = vshll.u32 2131351028, %v167
        %v177 = vshrl.u32 2102212464, %v168
        %v178 = vor.u32 %v176, %v177
        %v179 = vshll.u32 2102212464, %v167
        %v180 = vshrl.u32 920167782, %v168
        %v181 = vor.u32 %v179, %v180
        %v182 = vshll.u32 920167782, %v167
        %v183 = vshrl.u32 1326507024, %v168
        %v184 = vor.u32 %v182, %v183
        %vm185 = vcmp.lt.s32.totalorder %v166, 1
        %vm186 = vcmp.lt.s32.totalorder %v166, 2
        %vm187 = vcmp.lt.s32.totalorder %v166, 3
        %vm188 = vcmp.lt.s32.totalorder %v166, 4
        %v189 = vsel %vm185, %v169, %v172
        %v190 = vsel %vm188, %v178, 2102212464
        %v191 = vsel %vm187, %v175, %v190
        %v192 = vsel %vm186, %v189, %v191
        %v193 = vsel %vm185, %v172, %v175
        %v194 = vsel %vm188, %v181, 920167782
        %v195 = vsel %vm187, %v178, %v194
        %v196 = vsel %vm186, %v193, %v195
        %v197 = vsel %vm185, %v175, %v178
        %v198 = vsel %vm188, %v184, 1326507024
        %v199 = vsel %vm187, %v181, %v198
        %v200 = vsel %vm186, %v197, %v199
        %v201 = vshll.u32 %v161, 8
        %v202 = vand.u32 %v201, 65535
        %v203 = vshrl.u32 %v201, 16
        %v204 = vand.u32 %v200, 65535
        %v205 = vshrl.u32 %v200, 16
        %v206 = vmul.u32 %v202, %v204
        %v207 = vmul.u32 %v202, %v205
        %v208 = vmul.u32 %v203, %v204
        %v209 = vmul.u32 %v203, %v205
        %v210 = vshll.u32 %v207, 16
        %v211 = vshrl.u32 %v207, 16
        %v212 = vshll.u32 %v208, 16
        %v213 = vshrl.u32 %v208, 16
        %vm214 = vc.u32 %v206, %v210
        %v215 = vsel %vm214, 1, 0
        %v216 = vadd.s32 %v206, %v210
        %v217 = vadd.s32 %v209, %v215
        %vm218 = vc.u32 %v216, %v212
        %v219 = vsel %vm218, 1, 0
        %v220 = vadd.s32 %v216, %v212
        %v221 = vadd.s32 %v217, %v219
        %v222 = vadd.s32 %v221, %v211
        %v223 = vadd.s32 %v222, %v213
        %v224 = vand.u32 %v201, 65535
        %v225 = vshrl.u32 %v201, 16
        %v226 = vand.u32 %v196, 65535
        %v227 = vshrl.u32 %v196, 16
        %v228 = vmul.u32 %v224, %v226
        %v229 = vmul.u32 %v224, %v227
        %v230 = vmul.u32 %v225, %v226
        %v231 = vmul.u32 %v225, %v227
        %v232 = vshll.u32 %v229, 16
        %v233 = vshrl.u32 %v229, 16
        %v234 = vshll.u32 %v230, 16
        %v235 = vshrl.u32 %v230, 16
        %vm236 = vc.u32 %v228, %v232
        %v237 = vsel %vm236, 1, 0
        %v238 = vadd.s32 %v228, %v232
        %v239 = vadd.s32 %v231, %v237
        %vm240 = vc.u32 %v238, %v234
        %v241 = vsel %vm240, 1, 0
        %v242 = vadd.s32 %v238, %v234
        %v243 = vadd.s32 %v239, %v241
        %v244 = vadd.s32 %v243, %v233
        %v245 = vadd.s32 %v244, %v235
        %v246 = vmul.u32 %v201, %v192
        %v247 = vadd.s32 %v223, %v242
        %vm248 = vc.u32 %v223, %v242
        %v249 = vadd.s32 %v245, 1
        %v250 = vsel %vm248, %v249, %v245
        %v251 = vadd.s32 %v246, %v250
        %v252 = vadd.s32 %v251, 536870912
        %v253 = vshrl.u32 %v252, 30
        %v254 = vshll.u32 %v253, 30
        %v255 = vsub.s32 %v251, %v254
        %vm256 = vcmp.lt.s32.totalorder %v255, 0
        %v257 = vsub.s32 0, %v255
        %v258 = vsel %vm256, %v257, %v255
        %v259 = vclz %v258
        %v260 = vsub.s32 %v259, 2
        %vm261 = vcmp.gt.s32.totalorder 0, %v260
        %v262 = vsel %vm261, 0, %v260
        %v263 = vsub.s32 32, %v262
        %v264 = vshll.u32 %v255, %v262
        %v265 = vshrl.u32 %v247, %v263
        %v266 = vor.u32 %v264, %v265
        %v267 = vsub.s32 4294967266, %v262
        %v268 = vadd.s32 %v267, 127
        %v269 = vshll.u32 %v268, 23
        %v270 = vor.u32 4788187, %v269
        %v271 = vand.u32 2147483647, %v270
        %v273 = vcvt.s32.f32 %v266
        %v274 = vmul.f32 %v273, %v271
        %v275 = vxor.u32 %v274, 2147483648
        %v276 = vsel %vm155, %v275, %v274
        %v277 = vsub.s32 4, %v253
        %v278 = vsel %vm155, %v277, %v253
        %v279 = vsel %vm154, %v149, %v276
        %v280 = vsel %vm154, 0, %v278
        %v281 = vmul.f32 %v279, %v279
        %v282 = vmul.f32 %v281, -0.001358992
        %v283 = vadd.f32 %v282, 0.041655596
        %v284 = vmul.f32 %v281, %v283
        %v285 = vadd.f32 %v284, -0.4999988
        %v286 = vmul.f32 %v281, %v285
        %v287 = vadd.f32 1.0, %v286
        %v288 = vmul.f32 %v279, %v279
        %v289 = vmul.f32 %v288, -0.00019511016
        %v290 = vadd.f32 %v289, 0.008332121
        %v291 = vmul.f32 %v288, %v290
        %v292 = vadd.f32 %v291, -0.16666654
        %v293 = vmul.f32 %v288, %v292
        %v294 = vadd.f32 %v293, 1.0
        %v295 = vmul.f32 %v294, %v279
        %vm296 = vweird.f32 %v149
        %v297 = vand.u32 %v280, 3
        %vm298 = vcmp.lt.s32.totalorder %v297, 2
        %vm299 = vcmp.eq.s32.totalorder %v297, 0
        %v300 = vxor.u32 %v295, 2147483648
        %v301 = vsel %vm299, %v287, %v300
        %vm302 = vcmp.eq.s32.totalorder %v297, 2
        %v303 = vxor.u32 %v287, 2147483648
        %v304 = vsel %vm302, %v303, %v295
        %v305 = vsel %vm298, %v301, %v304
        %v306 = vsel %vm296, nan, %v305
        %v307 = vand.u32 2147483647, %v149
        %vm308 = vcmp.le.f32.partialorder %v307, 0.7853982
        %vm309 = vcmp.lt.s32.totalorder %v149, 0
        %v310 = vand.u32 %v149, 2139095040
        %v311 = vshrl.u32 %v310, 23
        %v312 = vsub.s32 %v311, 127
        %v313 = vand.u32 2147483647, %v149
        %v314 = vand.u32 %v313, 8388607
        %v315 = vor.u32 %v314, 8388608
        %v316 = vsub.s32 0, %v315
        %v317 = vadd.s32 %v312, 1
        %vm318 = vcmp.gt.s32.totalorder %v317, 0
        %v319 = vsel %vm318, %v317, 0
        %v320 = vshrl.u32 %v319, 5
        %v321 = vand.u32 %v319, 31
        %v322 = vsub.s32 32, %v321
        %v323 = vshrl.u32 683565275, %v322
        %v324 = vshll.u32 683565275, %v321
        %v325 = vshrl.u32 2475754826, %v322
        %v326 = vor.u32 %v324, %v325
        %v327 = vshll.u32 2475754826, %v321
        %v328 = vshrl.u32 2131351028, %v322
        %v329 = vor.u32 %v327, %v328
        %v330 = vshll.u32 2131351028, %v321
        %v331 = vshrl.u32 2102212464, %v322
        %v332 = vor.u32 %v330, %v331
        %v333 = vshll.u32 2102212464, %v321
        %v334 = vshrl.u32 920167782, %v322
        %v335 = vor.u32 %v333, %v334
        %v336 = vshll.u32 920167782, %v321
        %v337 = vshrl.u32 1326507024, %v322
        %v338 = vor.u32 %v336, %v337
        %vm339 = vcmp.lt.s32.totalorder %v320, 1
        %vm340 = vcmp.lt.s32.totalorder %v320, 2
        %vm341 = vcmp.lt.s32.totalorder %v320, 3
        %vm342 = vcmp.lt.s32.totalorder %v320, 4
        %v343 = vsel %vm339, %v323, %v326
        %v344 = vsel %vm342, %v332, 2102212464
        %v345 = vsel %vm341, %v329, %v344
        %v346 = vsel %vm340, %v343, %v345
        %v347 = vsel %vm339, %v326, %v329
        %v348 = vsel %vm342, %v335, 920167782
        %v349 = vsel %vm341, %v332, %v348
        %v350 = vsel %vm340, %v347, %v349
        %v351 = vsel %vm339, %v329, %v332
        %v352 = vsel %vm342, %v338, 1326507024
        %v353 = vsel %vm341, %v335, %v352
        %v354 = vsel %vm340, %v351, %v353
        %v355 = vshll.u32 %v315, 8
        %v356 = vand.u32 %v355, 65535
        %v357 = vshrl.u32 %v355, 16
        %v358 = vand.u32 %v354, 65535
        %v359 = vshrl.u32 %v354, 16
        %v360 = vmul.u32 %v356, %v358
        %v361 = vmul.u32 %v356, %v359
        %v362 = vmul.u32 %v357, %v358
        %v363 = vmul.u32 %v357, %v359
        %v364 = vshll.u32 %v361, 16
        %v365 = vshrl.u32 %v361, 16
        %v366 = vshll.u32 %v362, 16
        %v367 = vshrl.u32 %v362, 16
        %vm368 = vc.u32 %v360, %v364
        %v369 = vsel %vm368, 1, 0
        %v370 = vadd.s32 %v360, %v364
        %v371 = vadd.s32 %v363, %v369
        %vm372 = vc.u32 %v370, %v366
        %v373 = vsel %vm372, 1, 0
        %v374 = vadd.s32 %v370, %v366
        %v375 = vadd.s32 %v371, %v373
        %v376 = vadd.s32 %v375, %v365
        %v377 = vadd.s32 %v376, %v367
        %v378 = vand.u32 %v355, 65535
        %v379 = vshrl.u32 %v355, 16
        %v380 = vand.u32 %v350, 65535
        %v381 = vshrl.u32 %v350, 16
        %v382 = vmul.u32 %v378, %v380
        %v383 = vmul.u32 %v378, %v381
        %v384 = vmul.u32 %v379, %v380
        %v385 = vmul.u32 %v379, %v381
        %v386 = vshll.u32 %v383, 16
        %v387 = vshrl.u32 %v383, 16
        %v388 = vshll.u32 %v384, 16
        %v389 = vshrl.u32 %v384, 16
        %vm390 = vc.u32 %v382, %v386
        %v391 = vsel %vm390, 1, 0
        %v392 = vadd.s32 %v382, %v386
        %v393 = vadd.s32 %v385, %v391
        %vm394 = vc.u32 %v392, %v388
        %v395 = vsel %vm394, 1, 0
        %v396 = vadd.s32 %v392, %v388
        %v397 = vadd.s32 %v393, %v395
        %v398 = vadd.s32 %v397, %v387
        %v399 = vadd.s32 %v398, %v389
        %v400 = vmul.u32 %v355, %v346
        %v401 = vadd.s32 %v377, %v396
        %vm402 = vc.u32 %v377, %v396
        %v403 = vadd.s32 %v399, 1
        %v404 = vsel %vm402, %v403, %v399
        %v405 = vadd.s32 %v400, %v404
        %v406 = vadd.s32 %v405, 536870912
        %v407 = vshrl.u32 %v406, 30
        %v408 = vshll.u32 %v407, 30
        %v409 = vsub.s32 %v405, %v408
        %vm410 = vcmp.lt.s32.totalorder %v409, 0
        %v411 = vsub.s32 0, %v409
        %v412 = vsel %vm410, %v411, %v409
        %v413 = vclz %v412
        %v414 = vsub.s32 %v413, 2
        %vm415 = vcmp.gt.s32.totalorder 0, %v414
        %v416 = vsel %vm415, 0, %v414
        %v417 = vsub.s32 32, %v416
        %v418 = vshll.u32 %v409, %v416
        %v419 = vshrl.u32 %v401, %v417
        %v420 = vor.u32 %v418, %v419
        %v421 = vsub.s32 4294967266, %v416
        %v422 = vadd.s32 %v421, 127
        %v423 = vshll.u32 %v422, 23
        %v424 = vor.u32 4788187, %v423
        %v425 = vand.u32 2147483647, %v424
        %v427 = vcvt.s32.f32 %v420
        %v428 = vmul.f32 %v427, %v425
        %v429 = vxor.u32 %v428, 2147483648
        %v430 = vsel %vm309, %v429, %v428
        %v431 = vsub.s32 4, %v407
        %v432 = vsel %vm309, %v431, %v407
        %v433 = vsel %vm308, %v149, %v430
        %v434 = vsel %vm308, 0, %v432
        %v435 = vmul.f32 %v433, %v433
        %v436 = vmul.f32 %v435, -0.001358992
        %v437 = vadd.f32 %v436, 0.041655596
        %v438 = vmul.f32 %v435, %v437
        %v439 = vadd.f32 %v438, -0.4999988
        %v440 = vmul.f32 %v435, %v439
        %v441 = vadd.f32 1.0, %v440
        %v442 = vmul.f32 %v433, %v433
        %v443 = vmul.f32 %v442, -0.00019511016
        %v444 = vadd.f32 %v443, 0.008332121
        %v445 = vmul.f32 %v442, %v444
        %v446 = vadd.f32 %v445, -0.16666654
        %v447 = vmul.f32 %v442, %v446
        %v448 = vadd.f32 %v447, 1.0
        %v449 = vmul.f32 %v448, %v433
        %vm450 = vweird.f32 %v149
        %v451 = vadd.s32 %v434, 3
        %v452 = vand.u32 %v451, 3
        %vm453 = vcmp.lt.s32.totalorder %v452, 2
        %vm454 = vcmp.eq.s32.totalorder %v452, 0
        %v455 = vxor.u32 %v449, 2147483648
        %v456 = vsel %vm454, %v441, %v455
        %vm457 = vcmp.eq.s32.totalorder %v452, 2
        %v458 = vxor.u32 %v441, 2147483648
        %v459 = vsel %vm457, %v458, %v449
        %v460 = vsel %vm453, %v456, %v459
        %v461 = vsel %vm450, nan, %v460
        %v462 = vsel %vm152, 1, 0
        %vm463 = vcmp.eq.s32.totalorder %v462, 1
        %v464 = vsel %vm463, %v306, %v461
        %vm465 = vcmask 261120
        %466 = vst.msk [vmem:[%s134] sm:$0xff] %vm465, %v464
        %s467 = sand.u32 %s71, 1
        %s468 = scalar_lea.sflag [#allocation3], %s467
        %s469 = sand.u32 %s71, 1
        %s470 = smul.addr %s469, 8
        %s471 = scalar_lea.vmem [#allocation2], %s470
        // Predicated region
        $region29: #{tpu_custom_call.1} parent=27 // pred_check
          %p472 = pneg %p81
        $region30: #{tpu_custom_call.1} parent=27 // pred_check_branch
          %474 = sbr.rel (%p472) target = $region32
        $region31: #{tpu_custom_call.1} parent=27 // pred_region
          %476 = vsyncadd %s468, 0
          %s477 = smul.addr %s16, 8
          %s478 = scalar_lea.hbm %s2, %s477
          %s480 = sshll.u32 %s471, 4
          %s481 = int_to_ptr.vmem [resolvable:$true] %s480
          %s482 = sshll.u32 %s478, 4
          %s483 = int_to_ptr.hbm [resolvable:$true] %s482
          %485 = dma.vmem_to_hbm [thread:$0]  %s481, 128, %s483, %s468
        $region32: #{tpu_custom_call.1} parent=27 // pred_fallthru
          _
      $region28: #{tpu_custom_call.1} parent=5 // pred_fallthru
        _
      %p486 = scmp.le.s32.totalorder 2, %s11
      // Predicated region
      $region33: #{tpu_custom_call.1} parent=5 // pred_check
        %p487 = pneg %p486
      $region34: #{tpu_custom_call.1} parent=5 // pred_check_branch
        %489 = sbr.rel (%p487) target = $region36
      $region35: #{tpu_custom_call.1} parent=5 // pred_region
        %s490 = ssub.s32 %s11, 2
        // Predicated region
        $region37: #{tpu_custom_call.1} parent=35 // pred_check
          %p491 = pneg %p87
        $region38: #{tpu_custom_call.1} parent=35 // pred_check_branch
          %493 = sbr.rel (%p491) target = $region40
        $region39: #{tpu_custom_call.1} parent=35 // pred_region
          %s494 = sand.u32 %s72, 1
          %s495 = scalar_lea.sflag [#allocation3], %s494
          %s496 = sand.u32 %s72, 1
          %s497 = smul.addr %s496, 8
          %s498 = scalar_lea.vmem [#allocation2], %s497
          %500 = dma.done %s495, 128
        $region40: #{tpu_custom_call.1} parent=35 // pred_fallthru
          _
      $region36: #{tpu_custom_call.1} parent=5 // pred_fallthru
        _
    $region6: #{tpu_custom_call.1} parent=1 // loop_footer
      %s15 = sadd.s32 1, %s11
    $region7: #{tpu_custom_call.1} parent=1 // loop_footer_branch
      %10 = sbr.rel target = $region3
    $region8: #{tpu_custom_call.1} parent=1 // loop_exit
      _
    %501 = vsyncpa [#allocation3], 1
    %s502 = scalar_lea.sflag [#allocation3], 1
    %503 = vsyncpa %s502, 1

</llo_original>
